<compile_context>
chip_gen: v7x
topology: tpu7x:2x2x1
jax: 0.10.0
libtpu: 0.0.40
codegen_flags: <defaults>
</compile_context>

<pallas_src>
import functools

import jax
import jax.numpy as jnp
import numpy as np
from jax.experimental import pallas as pl
from jax.experimental.pallas import tpu as pltpu


def _round_up(x, m):
    return ((x + m - 1) // m) * m


def _vmem_limit_bytes(estimate_bytes):
    # Generation-aware cap: physical VMEM minus headroom for compiler scratch.
    try:
        cap = int(pltpu.get_tpu_info().vmem_capacity_bytes)
    except Exception:  # conservative fallback (v7x physical VMEM per TC)
        cap = 64 << 20
    ceiling = max(cap - (16 << 20), 32 << 20)
    return int(min(max(estimate_bytes + (8 << 20), 32 << 20), ceiling))


# --------------- Stage 1: XW = inputs @ weight  (f32 in, bf16 out) ----------
def _xw_kernel(x_ref, w_ref, xw_ref):
    # x_ref: (tm, D) f32, w_ref: (D, Hp) f32, xw_ref: (tm, Hp) bf16
    xw_ref[...] = jnp.dot(
        x_ref[...], w_ref[...], preferred_element_type=jnp.float32
    ).astype(xw_ref.dtype)


# --------------- Stage 2: out = relu(adj @ XW), K-tiled ---------------------
def _aggregate_kernel(adj_ref, xw_ref, out_ref, acc_ref, *, n_cols, tk, mask_cols):
    # adj_ref: (tm, tk) f32, xw_ref: (tk, Hp) bf16, out_ref: (tm, Hp) f32
    # acc_ref: (tm, Hp) f32 scratch accumulator persisting across the K axis.
    k = pl.program_id(1)

    @pl.when(k == 0)
    def _():
        acc_ref[...] = jnp.zeros_like(acc_ref)

    a = adj_ref[...]
    if mask_cols:
        # Ragged K edge: zero adjacency columns past N so (possibly
        # uninitialized) out-of-range buffer data never reaches the
        # accumulator.  Statically elided when tk divides N.
        col = k * tk + jax.lax.broadcasted_iota(jnp.int32, a.shape, 1)
        a = jnp.where(col < n_cols, a, 0.0)

    acc_ref[...] += jnp.dot(
        a, xw_ref[...].astype(jnp.float32), preferred_element_type=jnp.float32
    )

    @pl.when(k == pl.num_programs(1) - 1)
    def _():
        out_ref[...] = jnp.maximum(acc_ref[...], 0.0).astype(out_ref.dtype)


def graph_conv_sparse(inputs, adj, weight, *, tm=512, tk=2048):
    """relu(adj @ (inputs @ weight)) via two Pallas TPU kernels."""
    N, D = inputs.shape
    H = weight.shape[1]
    assert adj.shape == (N, N)

    # ---- tiled geometry -----------------------------------------------------
    Hp = _round_up(H, 128)                       # lane-dense output columns
    # Row tile: large (memory-bound wants >=512) but capped so there are >= 2
    # row tiles whenever possible (both v7x TensorCores get work).
    tm_eff = max(8, min(_round_up(tm, 8), _round_up((N + 1) // 2, 8)))
    n_row = pl.cdiv(N, tm_eff)
    # K (contraction) tile: multiple of 128, capped at ~2048.
    tk_eff = min(_round_up(tk, 128), _round_up(N, 128))
    Kp = _round_up(N, tk_eff)
    n_k = Kp // tk_eff

    # ---- cheap O(N*D) / O(D*Hp) pads only; adj is never copied --------------
    w_p = weight if Hp == H else jnp.zeros((D, Hp), weight.dtype).at[:, :H].set(weight)
    x_p = inputs if Kp == N else jnp.zeros((Kp, D), inputs.dtype).at[:N, :].set(inputs)

    # ---- stage 1: XW (bf16, Kp rows; rows >= N are exact zeros) -------------
    s1_vmem = 2 * (tm_eff * D * 4 + D * Hp * 4 + tm_eff * Hp * 2)
    xw = pl.pallas_call(
        _xw_kernel,
        out_shape=jax.ShapeDtypeStruct((Kp, Hp), jnp.bfloat16),
        grid_spec=pltpu.PrefetchScalarGridSpec(
            num_scalar_prefetch=0,
            grid=(pl.cdiv(Kp, tm_eff),),
            in_specs=[
                pl.BlockSpec((tm_eff, D), lambda i: (i, 0)),   # inputs row tile
                pl.BlockSpec((D, Hp), lambda i: (0, 0)),        # full weight
            ],
            out_specs=pl.BlockSpec((tm_eff, Hp), lambda i: (i, 0)),
        ),
        compiler_params=pltpu.CompilerParams(
            dimension_semantics=("parallel",),
            vmem_limit_bytes=_vmem_limit_bytes(s1_vmem),
        ),
    )(x_p, w_p)

    # ---- stage 2: relu(adj @ XW), K-tiled with f32 accumulator --------------
    s2_vmem = (2 * tm_eff * tk_eff * 4 + 2 * tk_eff * Hp * 2
               + 2 * tm_eff * Hp * 4 + tm_eff * Hp * 4)
    agg = functools.partial(
        _aggregate_kernel, n_cols=N, tk=tk_eff, mask_cols=(N % tk_eff != 0)
    )
    out = pl.pallas_call(
        agg,
        out_shape=jax.ShapeDtypeStruct((N, Hp), jnp.float32),
        grid_spec=pltpu.PrefetchScalarGridSpec(
            num_scalar_prefetch=0,
            grid=(n_row, n_k),
            in_specs=[
                pl.BlockSpec((tm_eff, tk_eff), lambda i, k: (i, k)),  # adj tile
                pl.BlockSpec((tk_eff, Hp), lambda i, k: (k, 0)),      # XW K tile
            ],
            out_specs=pl.BlockSpec((tm_eff, Hp), lambda i, k: (i, 0)),
            scratch_shapes=[pltpu.VMEM((tm_eff, Hp), jnp.float32)],
        ),
        compiler_params=pltpu.CompilerParams(
            dimension_semantics=("parallel", "arbitrary"),
            vmem_limit_bytes=_vmem_limit_bytes(s2_vmem),
        ),
    )(adj, xw)

    return out[:, :H]


def random_uniform_init(key, input_dim, output_dim):
    # matches: torch.rand(in, out) * 2*r - r with r = sqrt(6/(in+out))
    init_range = np.sqrt(6.0 / (input_dim + output_dim))
    return jax.random.uniform(
        key, (input_dim, output_dim), dtype=jnp.float32,
        minval=-init_range, maxval=init_range,
    )


if __name__ == "__main__":
    # Small Cora-like graph: N nodes, D input features, H output features.
    # N is deliberately NOT a multiple of any tile, and tm/tk are shrunk so the
    # K-tiled accumulator and ragged-edge masking paths are all exercised.
    N, D, H = 500, 32, 64

    key = jax.random.PRNGKey(0)
    k_x, k_adj, k_w = jax.random.split(key, 3)

    inputs = jax.random.normal(k_x, (N, D), dtype=jnp.float32)

    # Dense row-normalized adjacency with self-loops (the sparse mm in the
    # reference is mathematically just a matmul, so a dense adj stands in).
    adj_raw = (jax.random.uniform(k_adj, (N, N)) < 0.1).astype(jnp.float32)
    adj = adj_raw + jnp.eye(N, dtype=jnp.float32)
    adj = adj / jnp.sum(adj, axis=1, keepdims=True)

    weight = random_uniform_init(k_w, D, H)

    out = graph_conv_sparse(inputs, adj, weight, tm=256, tk=256)
    out = jax.block_until_ready(out)

    # PyTorch-style f32 reference; the only intentional deviation is bf16
    # storage of the small XW intermediate (f32 accumulation throughout).
    ref = jnp.maximum(adj @ (inputs @ weight), 0.0)
    np.testing.assert_allclose(np.asarray(out), np.asarray(ref),
                               rtol=1e-2, atol=1e-2)

    print("KERNEL_OK")
</pallas_src>

<mosaic_0001>
module attributes {stable_mosaic.version = 11 : i64} {
  func.func @_xw_kernel(%arg0: i32, %arg1: memref<256x32xf32, #tpu.memory_space<vmem>>, %arg2: memref<32x128xf32, #tpu.memory_space<vmem>>, %arg3: memref<256x128xbf16, #tpu.memory_space<vmem>>) attributes {dimension_semantics = [#tpu.dimension_semantics<parallel>], iteration_bounds = array<i64: 2>, scalar_prefetch = 0 : i64, scratch_operands = 0 : i64, tpu.core_type = #tpu.core_type<tc>, window_params = [{transform_indices = @transform_0, window_bounds = array<i64: 256, 32>}, {pipeline_mode = #tpu.pipeline_mode<synchronous>, transform_indices = @transform_1, window_bounds = array<i64: 32, 128>}, {transform_indices = @transform_2, window_bounds = array<i64: 256, 128>}]} {
    %c0 = arith.constant 0 : index
    %c0_0 = arith.constant 0 : index
    %0 = vector.load %arg1[%c0, %c0_0] : memref<256x32xf32, #tpu.memory_space<vmem>>, vector<256x32xf32>
    %c0_1 = arith.constant 0 : index
    %c0_2 = arith.constant 0 : index
    %1 = vector.load %arg2[%c0_1, %c0_2] : memref<32x128xf32, #tpu.memory_space<vmem>>, vector<32x128xf32>
    %cst = arith.constant dense<0.000000e+00> : vector<256x128xf32>
    %2 = tpu.matmul %0, %1, %cst {dimension_numbers = #tpu.dot_dimension_numbers<[1], [0], [0], [1], [0, 0, 1, 1], [], []>} : vector<256x32xf32>, vector<32x128xf32>, vector<256x128xf32> -> vector<256x128xf32>
    %3 = arith.truncf %2 : vector<256x128xf32> to vector<256x128xbf16>
    %c0_3 = arith.constant 0 : index
    %c0_4 = arith.constant 0 : index
    %4 = vector.load %arg3[%c0_3, %c0_4] : memref<256x128xbf16, #tpu.memory_space<vmem>>, vector<256x128xbf16>
    tpu.vector_store %arg3[%c0_3, %c0_4], %3 {strides = array<i32>} : memref<256x128xbf16, #tpu.memory_space<vmem>>, vector<256x128xbf16>,
    return
  }
  func.func @transform_0(%arg0: i32) -> (i32, i32) {
    %c0_i32 = arith.constant 0 : i32
    %c0_i32_0 = arith.constant 0 : i32
    return %arg0, %c0_i32 : i32, i32
  }
  func.func @transform_1(%arg0: i32) -> (i32, i32) {
    %c0_i32 = arith.constant 0 : i32
    %c0_i32_0 = arith.constant 0 : i32
    %c0_i32_1 = arith.constant 0 : i32
    return %c0_i32, %c0_i32_0 : i32, i32
  }
  func.func @transform_2(%arg0: i32) -> (i32, i32) {
    %c0_i32 = arith.constant 0 : i32
    %c0_i32_0 = arith.constant 0 : i32
    return %arg0, %c0_i32 : i32, i32
  }
}

</mosaic_0001>

<llo_original>
// kernel: tpu_custom_call.1
$region0: #{tpu_custom_call.1}
  #allocation0 [shape = 'u32[]', space=smem, size = 0x4, offset = 0x4, fixed_abs, tag = 'smem constant byte address 0x4 - core index']
  #allocation1 [shape = 'u32[144,128]{1,0:T(1,128)}', space=vmem, size = 0x12000, scoped, tag = 'internal scratch']
  %s0 = inlined_call_operand.vmem [shape: f32[512,32], index: 0, kind: input, shape index: {}]
  %s1 = inlined_call_operand.vmem [shape: f32[32,128], index: 1, kind: input, shape index: {}]
  %s2 = inlined_call_operand.hbm [shape: bf16[512,128], index: 2, kind: output, shape index: {}]
  %s3 = sld [smem:[#allocation0]]
  $region41: #{tpu_custom_call.1} parent=0
    _
  %s5 = ssub.s32 1, %s3
  %s6 = scalar_select 0, %s5, %s3
  $region1: #{tpu_custom_call.1} parent=0
    #allocation2 [shape = 'u8[131072]{0}', space=vmem, size = 0x20000, scoped, tag = 'output window, operand 0']
    #allocation3 [shape = 's32[2]{0}', space=sflag, size = 0x8, scoped, tag = 'scoped memory for tpu_custom_call.1']
    %7 = vsyncpa [#allocation3], 0
    %s8 = scalar_lea.sflag [#allocation3], 1
    %9 = vsyncpa %s8, 0
    loop: start=0, step=1, limit=4
    $region2: #{tpu_custom_call.1} parent=1 // loop_pre_header
      _
    $region3: #{tpu_custom_call.1} parent=1 // loop_header
      %s11 = sphi 0, %s15
      %p12 = scmp.ge.s32.totalorder %s11, 4
      %s21 = sphi 0, %s23
      %s24 = sphi 0, %s21
      %s25 = sphi 0, %s24
      %s41 = sphi 0, %s25
      %s45 = sphi 0, %s45
      %s47 = sphi 0, %s45
      %s48 = sphi 0, %s47
      %s62 = sphi 0, %s48
      %s68 = sphi 0, %s70
      %s71 = sphi 0, %s68
      %s72 = sphi 0, %s71
      %s88 = sphi 0, %s72
    $region4: #{tpu_custom_call.1} parent=1 // loop_header_branch
      %14 = sbr.rel (%p12) target = $region8
    $region5: #{tpu_custom_call.1} parent=1 // loop_body
      %s16 = ssub.s32 %s11, 1
      %s17 = ssub.s32 %s11, 2
      %s18 = sadd.s32 %s11, 1
      %s19 = ssub.s32 %s11, %s18
      %p20 = scmp.eq.s32.totalorder %s19, 0
      %s22 = sadd.s32 %s21, 1
      %s23 = scalar_select %p20, %s21, %s22
      %p26 = pneg %p20
      %p27 = scmp.eq.s32.totalorder %s11, 1
      %p28 = por %p26, %p27
      %p29 = scmp.ne.s32.totalorder %s21, %s24
      %p30 = scmp.eq.s32.totalorder %s11, 0
      %p31 = por %p29, %p30
      %p32 = scmp.ne.s32.totalorder %s21, %s24
      %p33 = scmp.eq.s32.totalorder %s16, 1
      %p34 = por %p32, %p33
      %p35 = scmp.ne.s32.totalorder %s24, %s25
      %p36 = scmp.eq.s32.totalorder %s16, 0
      %p37 = por %p35, %p36
      %p38 = scmp.ne.s32.totalorder %s24, %s25
      %p39 = scmp.eq.s32.totalorder %s17, 1
      %p40 = por %p38, %p39
      %p42 = scmp.ne.s32.totalorder %s25, %s41
      %p43 = scmp.eq.s32.totalorder %s17, 0
      %p44 = por %p42, %p43
      %s46 = sadd.s32 %s45, 1
      %p49 = scmp.eq.s32.totalorder %s11, 1
      %p50 = scmp.ne.s32.totalorder %s45, %s47
      %p51 = scmp.eq.s32.totalorder %s11, 0
      %p52 = por %p50, %p51
      %p53 = scmp.ne.s32.totalorder %s45, %s47
      %p54 = scmp.eq.s32.totalorder %s16, 1
      %p55 = por %p53, %p54
      %p56 = scmp.ne.s32.totalorder %s47, %s48
      %p57 = scmp.eq.s32.totalorder %s16, 0
      %p58 = por %p56, %p57
      %p59 = scmp.ne.s32.totalorder %s47, %s48
      %p60 = scmp.eq.s32.totalorder %s17, 1
      %p61 = por %p59, %p60
      %p63 = scmp.ne.s32.totalorder %s48, %s62
      %p64 = scmp.eq.s32.totalorder %s17, 0
      %p65 = por %p63, %p64
      %s66 = ssub.s32 %s11, %s18
      %p67 = scmp.eq.s32.totalorder %s66, 0
      %s69 = sadd.s32 %s68, 1
      %s70 = scalar_select %p67, %s68, %s69
      %p73 = pneg %p67
      %p74 = scmp.eq.s32.totalorder %s11, 1
      %p75 = por %p73, %p74
      %p76 = scmp.ne.s32.totalorder %s68, %s71
      %p77 = scmp.eq.s32.totalorder %s11, 0
      %p78 = por %p76, %p77
      %p79 = scmp.ne.s32.totalorder %s68, %s71
      %p80 = scmp.eq.s32.totalorder %s16, 1
      %p81 = por %p79, %p80
      %p82 = scmp.ne.s32.totalorder %s71, %s72
      %p83 = scmp.eq.s32.totalorder %s16, 0
      %p84 = por %p82, %p83
      %p85 = scmp.ne.s32.totalorder %s71, %s72
      %p86 = scmp.eq.s32.totalorder %s17, 1
      %p87 = por %p85, %p86
      %p89 = scmp.ne.s32.totalorder %s72, %s88
      %p90 = scmp.eq.s32.totalorder %s17, 0
      %p91 = por %p89, %p90
      %p92 = scmp.le.s32.totalorder 1, %s11
      %p93 = scmp.lt.s32.totalorder %s11, 3
      %p94 = pnand %p92, %p93
      %p95 = pneg %p94
      // Predicated region
      $region9: #{tpu_custom_call.1} parent=5 // pred_check
        _
      $region10: #{tpu_custom_call.1} parent=5 // pred_check_branch
        %97 = sbr.rel (%p94) target = $region12
      $region11: #{tpu_custom_call.1} parent=5 // pred_region
        %s98 = ssub.s32 %s11, 1
        // Predicated region
        $region13: #{tpu_custom_call.1} parent=11 // pred_check
          %p99 = pneg %p58
        $region14: #{tpu_custom_call.1} parent=11 // pred_check_branch
          %101 = sbr.rel (%p99) target = $region16
        $region15: #{tpu_custom_call.1} parent=11 // pred_region
          _
        $region16: #{tpu_custom_call.1} parent=11 // pred_fallthru
          _
      $region12: #{tpu_custom_call.1} parent=5 // pred_fallthru
        _
      %p102 = scmp.lt.s32.totalorder %s11, 2
      // Predicated region
      $region17: #{tpu_custom_call.1} parent=5 // pred_check
        %p103 = pneg %p102
      $region18: #{tpu_custom_call.1} parent=5 // pred_check_branch
        %105 = sbr.rel (%p103) target = $region20
      $region19: #{tpu_custom_call.1} parent=5 // pred_region
        // Predicated region
        $region21: #{tpu_custom_call.1} parent=19 // pred_check
          %p106 = pneg %p31
        $region22: #{tpu_custom_call.1} parent=19 // pred_check_branch
          %108 = sbr.rel (%p106) target = $region24
        $region23: #{tpu_custom_call.1} parent=19 // pred_region
          %s109 = smul.u32 32, %s11
          %p110 = scmp.lt.s32.totalorder %s109, 63
          %s111 = scalar_select %p110, %s109, 63
          %s112 = smul.addr %s111, 8
          %s113 = scalar_lea.vmem %s0, %s112
          %s114 = smul.u32 32, %s11
        $region24: #{tpu_custom_call.1} parent=19 // pred_fallthru
          _
      $region20: #{tpu_custom_call.1} parent=5 // pred_fallthru
        _
      %p115 = scmp.le.s32.totalorder 1, %s11
      %p116 = scmp.lt.s32.totalorder %s11, 3
      %p117 = pnand %p115, %p116
      %p118 = pneg %p117
      // Predicated region
      $region25: #{tpu_custom_call.1} parent=5 // pred_check
        _
      $region26: #{tpu_custom_call.1} parent=5 // pred_check_branch
        %120 = sbr.rel (%p117) target = $region28
      $region27: #{tpu_custom_call.1} parent=5 // pred_region
        %s121 = ssub.s32 %s11, 1
        %s122 = smul.u32 32, %s16
        %p123 = scmp.lt.s32.totalorder %s122, 63
        %s124 = scalar_select %p123, %s122, 63
        %s125 = smul.addr %s124, 8
        %s126 = scalar_lea.vmem %s0, %s125
        %p127 = pneg %p37
        %p128 = pneg %p34
        %p129 = pneg %p58
        %p130 = pneg %p55
        %p131 = pneg %p84
        %p132 = pneg %p81
        %s133 = sand.u32 %s71, 1
        %s134 = scalar_lea.sflag [#allocation3], %s133
        %s135 = sand.u32 %s71, 1
        %s136 = smul.addr %s135, 128
        %s137 = scalar_lea.vmem [#allocation2], %s136
        %s138 = smul.u32 32, %s16
        %p139 = scmp.lt.s32.totalorder %s138, 63
        %s140 = scalar_select %p139, %s138, 63
        %s141 = smul.addr %s140, 8
        %s142 = scalar_lea.vmem %s0, %s141
        %s143 = smul.u32 32, %s16
        %s144 = smul.u32 32, %s16
        %v145 = vld [vmem:[%s142] sm:$0xff]
        %v146 = vld [vmem:[%s142 + $0x8] sm:$0xff]
        %v147 = vld [vmem:[%s142 + $0x10] sm:$0xff]
        %v148 = vld [vmem:[%s142 + $0x18] sm:$0xff]
        %v149 = vld [vmem:[%s142 + $0x20] sm:$0xff]
        %v150 = vld [vmem:[%s142 + $0x28] sm:$0xff]
        %v151 = vld [vmem:[%s142 + $0x30] sm:$0xff]
        %v152 = vld [vmem:[%s142 + $0x38] sm:$0xff]
        %v153 = vld [vmem:[%s142 + $0x40] sm:$0xff]
        %v154 = vld [vmem:[%s142 + $0x48] sm:$0xff]
        %v155 = vld [vmem:[%s142 + $0x50] sm:$0xff]
        %v156 = vld [vmem:[%s142 + $0x58] sm:$0xff]
        %v157 = vld [vmem:[%s142 + $0x60] sm:$0xff]
        %v158 = vld [vmem:[%s142 + $0x68] sm:$0xff]
        %v159 = vld [vmem:[%s142 + $0x70] sm:$0xff]
        %v160 = vld [vmem:[%s142 + $0x78] sm:$0xff]
        %v161 = vld [vmem:[%s142 + $0x80] sm:$0xff]
        %v162 = vld [vmem:[%s142 + $0x88] sm:$0xff]
        %v163 = vld [vmem:[%s142 + $0x90] sm:$0xff]
        %v164 = vld [vmem:[%s142 + $0x98] sm:$0xff]
        %v165 = vld [vmem:[%s142 + $0xa0] sm:$0xff]
        %v166 = vld [vmem:[%s142 + $0xa8] sm:$0xff]
        %v167 = vld [vmem:[%s142 + $0xb0] sm:$0xff]
        %v168 = vld [vmem:[%s142 + $0xb8] sm:$0xff]
        %v169 = vld [vmem:[%s142 + $0xc0] sm:$0xff]
        %v170 = vld [vmem:[%s142 + $0xc8] sm:$0xff]
        %v171 = vld [vmem:[%s142 + $0xd0] sm:$0xff]
        %v172 = vld [vmem:[%s142 + $0xd8] sm:$0xff]
        %v173 = vld [vmem:[%s142 + $0xe0] sm:$0xff]
        %v174 = vld [vmem:[%s142 + $0xe8] sm:$0xff]
        %v175 = vld [vmem:[%s142 + $0xf0] sm:$0xff]
        %v176 = vld [vmem:[%s142 + $0xf8] sm:$0xff]
        %v177 = vld [vmem:[%s1] sm:$0xff]
        %v178 = vld [vmem:[%s1 + $0x8] sm:$0xff]
        %v179 = vld [vmem:[%s1 + $0x10] sm:$0xff]
        %v180 = vld [vmem:[%s1 + $0x18] sm:$0xff]
        %vm181 = vcmask 261120
        %v183 = vsel %vm181, %v145, 0
        %v186 = vsel %vm181, %v146, 0
        %v189 = vsel %vm181, %v147, 0
        %v192 = vsel %vm181, %v148, 0
        %v195 = vsel %vm181, %v149, 0
        %v198 = vsel %vm181, %v150, 0
        %v201 = vsel %vm181, %v151, 0
        %v204 = vsel %vm181, %v152, 0
        %v207 = vsel %vm181, %v153, 0
        %v210 = vsel %vm181, %v154, 0
        %v213 = vsel %vm181, %v155, 0
        %v216 = vsel %vm181, %v156, 0
        %v219 = vsel %vm181, %v157, 0
        %v222 = vsel %vm181, %v158, 0
        %v225 = vsel %vm181, %v159, 0
        %v228 = vsel %vm181, %v160, 0
        %v231 = vsel %vm181, %v161, 0
        %v234 = vsel %vm181, %v162, 0
        %v237 = vsel %vm181, %v163, 0
        %v240 = vsel %vm181, %v164, 0
        %v243 = vsel %vm181, %v165, 0
        %v246 = vsel %vm181, %v166, 0
        %v249 = vsel %vm181, %v167, 0
        %v252 = vsel %vm181, %v168, 0
        %v255 = vsel %vm181, %v169, 0
        %v258 = vsel %vm181, %v170, 0
        %v261 = vsel %vm181, %v171, 0
        %v264 = vsel %vm181, %v172, 0
        %v267 = vsel %vm181, %v173, 0
        %v270 = vsel %vm181, %v174, 0
        %v273 = vsel %vm181, %v175, 0
        %v276 = vsel %vm181, %v176, 0
        %278 = vmatprep.subr.mxu0 0.0
        %279 = vmatpush1.msra.mxu0 %v177
        %280 = vmatprep.subr.mxu0 0.0
        %281 = vmatpush1.msra.mxu0 %v178
        %282 = vmatprep.subr.mxu0 0.0
        %283 = vmatpush1.msra.mxu0 %v179
        %284 = vmatprep.subr.mxu0 0.0
        %285 = vmatpush1.msra.mxu0 %v180
        %286 = vmatprep.subr.mxu0 0.0
        %287 = vmatpush1.msra.mxu0 0.0
        %288 = vmatprep.subr.mxu0 0.0
        %289 = vmatpush1.msra.mxu0 0.0
        %290 = vmatprep.subr.mxu0 0.0
        %291 = vmatpush1.msra.mxu0 0.0
        %292 = vmatprep.subr.mxu0 0.0
        %293 = vmatpush1.msra.mxu0 0.0
        %294 = vmatprep.subr.mxu0 0.0
        %295 = vmatpush1.msra.mxu0 0.0
        %296 = vmatprep.subr.mxu0 0.0
        %297 = vmatpush1.msra.mxu0 0.0
        %298 = vmatprep.subr.mxu0 0.0
        %299 = vmatpush1.msra.mxu0 0.0
        %300 = vmatprep.subr.mxu0 0.0
        %301 = vmatpush1.msra.mxu0 0.0
        %302 = vmatprep.subr.mxu0 0.0
        %303 = vmatpush1.msra.mxu0 0.0
        %304 = vmatprep.subr.mxu0 0.0
        %305 = vmatpush1.msra.mxu0 0.0
        %306 = vmatprep.subr.mxu0 0.0
        %307 = vmatpush1.msra.mxu0 0.0
        %308 = vmatprep.subr.mxu0 0.0
        %309 = vmatpush1.msra.mxu0 0.0
        %310 = vmatprep.subr.mxu0 0.0
        %311 = vmatpush1.msra.mxu0 0.0
        %312 = vmatprep.subr.mxu0 0.0
        %313 = vmatpush1.msra.mxu0 0.0
        %314 = vmatprep.subr.mxu0 0.0
        %315 = vmatpush1.msra.mxu0 0.0
        %316 = vmatprep.subr.mxu0 0.0
        %317 = vmatpush1.msra.mxu0 0.0
        %318 = vmatprep.subr.mxu0 0.0
        %319 = vmatpush1.msra.mxu0 0.0
        %320 = vmatprep.subr.mxu0 0.0
        %321 = vmatpush1.msra.mxu0 0.0
        %322 = vmatprep.subr.mxu0 0.0
        %323 = vmatpush1.msra.mxu0 0.0
        %324 = vmatprep.subr.mxu0 0.0
        %325 = vmatpush1.msra.mxu0 0.0
        %326 = vmatprep.subr.mxu0 0.0
        %327 = vmatpush1.msra.mxu0 0.0
        %328 = vmatprep.subr.mxu0 0.0
        %329 = vmatpush1.msra.mxu0 0.0
        %330 = vmatprep.subr.mxu0 0.0
        %331 = vmatpush1.msra.mxu0 0.0
        %332 = vmatprep.subr.mxu0 0.0
        %333 = vmatpush1.msra.mxu0 0.0
        %334 = vmatprep.subr.mxu0 0.0
        %335 = vmatpush1.msra.mxu0 0.0
        %336 = vmatprep.subr.mxu0 0.0
        %337 = vmatpush1.msra.mxu0 0.0
        %338 = vmatprep.subr.mxu0 0.0
        %339 = vmatpush1.msra.mxu0 0.0
        %340 = vmatprep.subr.mxu0 0.0
        %341 = vmatpush1.msra.mxu0 0.0
        %342 = vmatprep.mubr.f32.mxu0 0.0
        %343 = vmatmul.mubr.f32.gmra.mrb[0].mxu0 %v183
        %v344 = vpop.f32.mrb[0].mxu0
        %v345 = vadd.f32 0.0, %v344
        %v346 = vpop.f32.mrb[0].mxu0
        %347 = vmatprep.mubr.f32.mxu0 0.0
        %348 = vmatmul.mubr.f32.gmra.mrb[0].mxu0 %v186
        %v349 = vpop.f32.mrb[0].mxu0
        %v350 = vadd.f32 0.0, %v349
        %v351 = vpop.f32.mrb[0].mxu0
        %352 = vmatprep.mubr.f32.mxu0 0.0
        %353 = vmatmul.mubr.f32.gmra.mrb[0].mxu0 %v189
        %v354 = vpop.f32.mrb[0].mxu0
        %v355 = vadd.f32 0.0, %v354
        %v356 = vpop.f32.mrb[0].mxu0
        %357 = vmatprep.mubr.f32.mxu0 0.0
        %358 = vmatmul.mubr.f32.gmra.mrb[0].mxu0 %v192
        %v359 = vpop.f32.mrb[0].mxu0
        %v360 = vadd.f32 0.0, %v359
        %v361 = vpop.f32.mrb[0].mxu0
        %362 = vmatprep.mubr.f32.mxu0 0.0
        %363 = vmatmul.mubr.f32.gmra.mrb[0].mxu0 %v195
        %v364 = vpop.f32.mrb[0].mxu0
        %v365 = vadd.f32 0.0, %v364
        %v366 = vpop.f32.mrb[0].mxu0
        %367 = vmatprep.mubr.f32.mxu0 0.0
        %368 = vmatmul.mubr.f32.gmra.mrb[0].mxu0 %v198
        %v369 = vpop.f32.mrb[0].mxu0
        %v370 = vadd.f32 0.0, %v369
        %v371 = vpop.f32.mrb[0].mxu0
        %372 = vmatprep.mubr.f32.mxu0 0.0
        %373 = vmatmul.mubr.f32.gmra.mrb[0].mxu0 %v201
        %v374 = vpop.f32.mrb[0].mxu0
        %v375 = vadd.f32 0.0, %v374
        %v376 = vpop.f32.mrb[0].mxu0
        %377 = vmatprep.mubr.f32.mxu0 0.0
        %378 = vmatmul.mubr.f32.gmra.mrb[0].mxu0 %v204
        %v379 = vpop.f32.mrb[0].mxu0
        %v380 = vadd.f32 0.0, %v379
        %v381 = vpop.f32.mrb[0].mxu0
        %382 = vmatprep.mubr.f32.mxu0 0.0
        %383 = vmatmul.mubr.f32.gmra.mrb[0].mxu0 %v207
        %v384 = vpop.f32.mrb[0].mxu0
        %v385 = vadd.f32 0.0, %v384
        %v386 = vpop.f32.mrb[0].mxu0
        %387 = vmatprep.mubr.f32.mxu0 0.0
        %388 = vmatmul.mubr.f32.gmra.mrb[0].mxu0 %v210
        %v389 = vpop.f32.mrb[0].mxu0
        %v390 = vadd.f32 0.0, %v389
        %v391 = vpop.f32.mrb[0].mxu0
        %392 = vmatprep.mubr.f32.mxu0 0.0
        %393 = vmatmul.mubr.f32.gmra.mrb[0].mxu0 %v213
        %v394 = vpop.f32.mrb[0].mxu0
        %v395 = vadd.f32 0.0, %v394
        %v396 = vpop.f32.mrb[0].mxu0
        %397 = vmatprep.mubr.f32.mxu0 0.0
        %398 = vmatmul.mubr.f32.gmra.mrb[0].mxu0 %v216
        %v399 = vpop.f32.mrb[0].mxu0
        %v400 = vadd.f32 0.0, %v399
        %v401 = vpop.f32.mrb[0].mxu0
        %402 = vmatprep.mubr.f32.mxu0 0.0
        %403 = vmatmul.mubr.f32.gmra.mrb[0].mxu0 %v219
        %v404 = vpop.f32.mrb[0].mxu0
        %v405 = vadd.f32 0.0, %v404
        %v406 = vpop.f32.mrb[0].mxu0
        %407 = vmatprep.mubr.f32.mxu0 0.0
        %408 = vmatmul.mubr.f32.gmra.mrb[0].mxu0 %v222
        %v409 = vpop.f32.mrb[0].mxu0
        %v410 = vadd.f32 0.0, %v409
        %v411 = vpop.f32.mrb[0].mxu0
        %412 = vmatprep.mubr.f32.mxu0 0.0
        %413 = vmatmul.mubr.f32.gmra.mrb[0].mxu0 %v225
        %v414 = vpop.f32.mrb[0].mxu0
        %v415 = vadd.f32 0.0, %v414
        %v416 = vpop.f32.mrb[0].mxu0
        %417 = vmatprep.mubr.f32.mxu0 0.0
        %418 = vmatmul.mubr.f32.gmra.mrb[0].mxu0 %v228
        %v419 = vpop.f32.mrb[0].mxu0
        %v420 = vadd.f32 0.0, %v419
        %v421 = vpop.f32.mrb[0].mxu0
        %422 = vmatprep.mubr.f32.mxu0 0.0
        %423 = vmatmul.mubr.f32.gmra.mrb[0].mxu0 %v231
        %v424 = vpop.f32.mrb[0].mxu0
        %v425 = vadd.f32 0.0, %v424
        %v426 = vpop.f32.mrb[0].mxu0
        %427 = vmatprep.mubr.f32.mxu0 0.0
        %428 = vmatmul.mubr.f32.gmra.mrb[0].mxu0 %v234
        %v429 = vpop.f32.mrb[0].mxu0
        %v430 = vadd.f32 0.0, %v429
        %v431 = vpop.f32.mrb[0].mxu0
        %432 = vmatprep.mubr.f32.mxu0 0.0
        %433 = vmatmul.mubr.f32.gmra.mrb[0].mxu0 %v237
        %v434 = vpop.f32.mrb[0].mxu0
        %v435 = vadd.f32 0.0, %v434
        %v436 = vpop.f32.mrb[0].mxu0
        %437 = vmatprep.mubr.f32.mxu0 0.0
        %438 = vmatmul.mubr.f32.gmra.mrb[0].mxu0 %v240
        %v439 = vpop.f32.mrb[0].mxu0
        %v440 = vadd.f32 0.0, %v439
        %v441 = vpop.f32.mrb[0].mxu0
        %442 = vmatprep.mubr.f32.mxu0 0.0
        %443 = vmatmul.mubr.f32.gmra.mrb[0].mxu0 %v243
        %v444 = vpop.f32.mrb[0].mxu0
        %v445 = vadd.f32 0.0, %v444
        %v446 = vpop.f32.mrb[0].mxu0
        %447 = vmatprep.mubr.f32.mxu0 0.0
        %448 = vmatmul.mubr.f32.gmra.mrb[0].mxu0 %v246
        %v449 = vpop.f32.mrb[0].mxu0
        %v450 = vadd.f32 0.0, %v449
        %v451 = vpop.f32.mrb[0].mxu0
        %452 = vmatprep.mubr.f32.mxu0 0.0
        %453 = vmatmul.mubr.f32.gmra.mrb[0].mxu0 %v249
        %v454 = vpop.f32.mrb[0].mxu0
        %v455 = vadd.f32 0.0, %v454
        %v456 = vpop.f32.mrb[0].mxu0
        %457 = vmatprep.mubr.f32.mxu0 0.0
        %458 = vmatmul.mubr.f32.gmra.mrb[0].mxu0 %v252
        %v459 = vpop.f32.mrb[0].mxu0
        %v460 = vadd.f32 0.0, %v459
        %v461 = vpop.f32.mrb[0].mxu0
        %462 = vmatprep.mubr.f32.mxu0 0.0
        %463 = vmatmul.mubr.f32.gmra.mrb[0].mxu0 %v255
        %v464 = vpop.f32.mrb[0].mxu0
        %v465 = vadd.f32 0.0, %v464
        %v466 = vpop.f32.mrb[0].mxu0
        %467 = vmatprep.mubr.f32.mxu0 0.0
        %468 = vmatmul.mubr.f32.gmra.mrb[0].mxu0 %v258
        %v469 = vpop.f32.mrb[0].mxu0
        %v470 = vadd.f32 0.0, %v469
        %v471 = vpop.f32.mrb[0].mxu0
        %472 = vmatprep.mubr.f32.mxu0 0.0
        %473 = vmatmul.mubr.f32.gmra.mrb[0].mxu0 %v261
        %v474 = vpop.f32.mrb[0].mxu0
        %v475 = vadd.f32 0.0, %v474
        %v476 = vpop.f32.mrb[0].mxu0
        %477 = vmatprep.mubr.f32.mxu0 0.0
        %478 = vmatmul.mubr.f32.gmra.mrb[0].mxu0 %v264
        %v479 = vpop.f32.mrb[0].mxu0
        %v480 = vadd.f32 0.0, %v479
        %v481 = vpop.f32.mrb[0].mxu0
        %482 = vmatprep.mubr.f32.mxu0 0.0
        %483 = vmatmul.mubr.f32.gmra.mrb[0].mxu0 %v267
        %v484 = vpop.f32.mrb[0].mxu0
        %v485 = vadd.f32 0.0, %v484
        %v486 = vpop.f32.mrb[0].mxu0
        %487 = vmatprep.mubr.f32.mxu0 0.0
        %488 = vmatmul.mubr.f32.gmra.mrb[0].mxu0 %v270
        %v489 = vpop.f32.mrb[0].mxu0
        %v490 = vadd.f32 0.0, %v489
        %v491 = vpop.f32.mrb[0].mxu0
        %492 = vmatprep.mubr.f32.mxu0 0.0
        %493 = vmatmul.mubr.f32.gmra.mrb[0].mxu0 %v273
        %v494 = vpop.f32.mrb[0].mxu0
        %v495 = vadd.f32 0.0, %v494
        %v496 = vpop.f32.mrb[0].mxu0
        %497 = vmatprep.mubr.f32.mxu0 0.0
        %498 = vmatmul.mubr.f32.gmra.mrb[0].mxu0 %v276
        %v499 = vpop.f32.mrb[0].mxu0
        %v500 = vadd.f32 0.0, %v499
        %v501 = vpop.f32.mrb[0].mxu0
        %502 = vdwg.mxu0
        %v503 = vpack.c.bf16 %v350, %v345
        %v504 = vpack.c.bf16 %v360, %v355
        %v505 = vpack.c.bf16 %v370, %v365
        %v506 = vpack.c.bf16 %v380, %v375
        %v507 = vpack.c.bf16 %v390, %v385
        %v508 = vpack.c.bf16 %v400, %v395
        %v509 = vpack.c.bf16 %v410, %v405
        %v510 = vpack.c.bf16 %v420, %v415
        %v511 = vpack.c.bf16 %v430, %v425
        %v512 = vpack.c.bf16 %v440, %v435
        %v513 = vpack.c.bf16 %v450, %v445
        %v514 = vpack.c.bf16 %v460, %v455
        %v515 = vpack.c.bf16 %v470, %v465
        %v516 = vpack.c.bf16 %v480, %v475
        %v517 = vpack.c.bf16 %v490, %v485
        %v518 = vpack.c.bf16 %v500, %v495
        %v535 = vunpack.c.l.b16 %v503
        %v536 = vunpack.c.h.b16 %v503
        %v537 = vunpack.c.l.b16 %v504
        %v538 = vunpack.c.h.b16 %v504
        %v539 = vunpack.c.l.b16 %v505
        %v540 = vunpack.c.h.b16 %v505
        %v541 = vunpack.c.l.b16 %v506
        %v542 = vunpack.c.h.b16 %v506
        %v543 = vunpack.c.l.b16 %v507
        %v544 = vunpack.c.h.b16 %v507
        %v545 = vunpack.c.l.b16 %v508
        %v546 = vunpack.c.h.b16 %v508
        %v547 = vunpack.c.l.b16 %v509
        %v548 = vunpack.c.h.b16 %v509
        %v549 = vunpack.c.l.b16 %v510
        %v550 = vunpack.c.h.b16 %v510
        %v551 = vunpack.c.l.b16 %v511
        %v552 = vunpack.c.h.b16 %v511
        %v553 = vunpack.c.l.b16 %v512
        %v554 = vunpack.c.h.b16 %v512
        %v555 = vunpack.c.l.b16 %v513
        %v556 = vunpack.c.h.b16 %v513
        %v557 = vunpack.c.l.b16 %v514
        %v558 = vunpack.c.h.b16 %v514
        %v559 = vunpack.c.l.b16 %v515
        %v560 = vunpack.c.h.b16 %v515
        %v561 = vunpack.c.l.b16 %v516
        %v562 = vunpack.c.h.b16 %v516
        %v563 = vunpack.c.l.b16 %v517
        %v564 = vunpack.c.h.b16 %v517
        %v565 = vunpack.c.l.b16 %v518
        %v566 = vunpack.c.h.b16 %v518
        %v567 = vpack.c.b16 %v535, %v535
        %v568 = vpack.c.b16 %v536, %v536
        %v569 = vpack.c.b16 %v537, %v537
        %v570 = vpack.c.b16 %v538, %v538
        %v571 = vpack.c.b16 %v539, %v539
        %v572 = vpack.c.b16 %v540, %v540
        %v573 = vpack.c.b16 %v541, %v541
        %v574 = vpack.c.b16 %v542, %v542
        %v575 = vpack.c.b16 %v543, %v543
        %v576 = vpack.c.b16 %v544, %v544
        %v577 = vpack.c.b16 %v545, %v545
        %v578 = vpack.c.b16 %v546, %v546
        %v579 = vpack.c.b16 %v547, %v547
        %v580 = vpack.c.b16 %v548, %v548
        %v581 = vpack.c.b16 %v549, %v549
        %v582 = vpack.c.b16 %v550, %v550
        %v583 = vpack.c.b16 %v551, %v551
        %v584 = vpack.c.b16 %v552, %v552
        %v585 = vpack.c.b16 %v553, %v553
        %v586 = vpack.c.b16 %v554, %v554
        %v587 = vpack.c.b16 %v555, %v555
        %v588 = vpack.c.b16 %v556, %v556
        %v589 = vpack.c.b16 %v557, %v557
        %v590 = vpack.c.b16 %v558, %v558
        %v591 = vpack.c.b16 %v559, %v559
        %v592 = vpack.c.b16 %v560, %v560
        %v593 = vpack.c.b16 %v561, %v561
        %v594 = vpack.c.b16 %v562, %v562
        %v595 = vpack.c.b16 %v563, %v563
        %v596 = vpack.c.b16 %v564, %v564
        %v597 = vpack.c.b16 %v565, %v565
        %v598 = vpack.c.b16 %v566, %v566
        %631 = vst [vmem:[%s137] sm:$0xf] %v567
        %632 = vst [vmem:[%s137 + $0x4] sm:$0xf] %v568
        %633 = vst [vmem:[%s137 + $0x8] sm:$0xf] %v569
        %634 = vst [vmem:[%s137 + $0xc] sm:$0xf] %v570
        %635 = vst [vmem:[%s137 + $0x10] sm:$0xf] %v571
        %636 = vst [vmem:[%s137 + $0x14] sm:$0xf] %v572
        %637 = vst [vmem:[%s137 + $0x18] sm:$0xf] %v573
        %638 = vst [vmem:[%s137 + $0x1c] sm:$0xf] %v574
        %639 = vst [vmem:[%s137 + $0x20] sm:$0xf] %v575
        %640 = vst [vmem:[%s137 + $0x24] sm:$0xf] %v576
        %641 = vst [vmem:[%s137 + $0x28] sm:$0xf] %v577
        %642 = vst [vmem:[%s137 + $0x2c] sm:$0xf] %v578
        %643 = vst [vmem:[%s137 + $0x30] sm:$0xf] %v579
        %644 = vst [vmem:[%s137 + $0x34] sm:$0xf] %v580
        %645 = vst [vmem:[%s137 + $0x38] sm:$0xf] %v581
        %646 = vst [vmem:[%s137 + $0x3c] sm:$0xf] %v582
        %647 = vst [vmem:[%s137 + $0x40] sm:$0xf] %v583
        %648 = vst [vmem:[%s137 + $0x44] sm:$0xf] %v584
        %649 = vst [vmem:[%s137 + $0x48] sm:$0xf] %v585
        %650 = vst [vmem:[%s137 + $0x4c] sm:$0xf] %v586
        %651 = vst [vmem:[%s137 + $0x50] sm:$0xf] %v587
        %652 = vst [vmem:[%s137 + $0x54] sm:$0xf] %v588
        %653 = vst [vmem:[%s137 + $0x58] sm:$0xf] %v589
        %654 = vst [vmem:[%s137 + $0x5c] sm:$0xf] %v590
        %655 = vst [vmem:[%s137 + $0x60] sm:$0xf] %v591
        %656 = vst [vmem:[%s137 + $0x64] sm:$0xf] %v592
        %657 = vst [vmem:[%s137 + $0x68] sm:$0xf] %v593
        %658 = vst [vmem:[%s137 + $0x6c] sm:$0xf] %v594
        %659 = vst [vmem:[%s137 + $0x70] sm:$0xf] %v595
        %660 = vst [vmem:[%s137 + $0x74] sm:$0xf] %v596
        %661 = vst [vmem:[%s137 + $0x78] sm:$0xf] %v597
        %662 = vst [vmem:[%s137 + $0x7c] sm:$0xf] %v598
        %s663 = sand.u32 %s71, 1
        %s664 = scalar_lea.sflag [#allocation3], %s663
        %s665 = sand.u32 %s71, 1
        %s666 = smul.addr %s665, 128
        %s667 = scalar_lea.vmem [#allocation2], %s666
        // Predicated region
        $region29: #{tpu_custom_call.1} parent=27 // pred_check
          %p668 = pneg %p81
        $region30: #{tpu_custom_call.1} parent=27 // pred_check_branch
          %670 = sbr.rel (%p668) target = $region32
        $region31: #{tpu_custom_call.1} parent=27 // pred_region
          %s671 = smul.u32 32, %s16
          %s673 = ssub.s32 2048, 2048
          %674 = vsyncadd %s664, %s673
          %s675 = smul.addr %s671, 64
          %s676 = scalar_lea.hbm %s2, %s675
          %s677 = sshll.u32 %s667, 4
          %s678 = int_to_ptr.vmem [resolvable:$true] %s677
          %683 = dma.vmem_to_hbm [thread:$0]  %s678, 2048, %s676, %s664, 64, 64, 4
        $region32: #{tpu_custom_call.1} parent=27 // pred_fallthru
          _
      $region28: #{tpu_custom_call.1} parent=5 // pred_fallthru
        _
      %p684 = scmp.le.s32.totalorder 2, %s11
      // Predicated region
      $region33: #{tpu_custom_call.1} parent=5 // pred_check
        %p685 = pneg %p684
      $region34: #{tpu_custom_call.1} parent=5 // pred_check_branch
        %687 = sbr.rel (%p685) target = $region36
      $region35: #{tpu_custom_call.1} parent=5 // pred_region
        %s688 = ssub.s32 %s11, 2
        // Predicated region
        $region37: #{tpu_custom_call.1} parent=35 // pred_check
          %p689 = pneg %p87
        $region38: #{tpu_custom_call.1} parent=35 // pred_check_branch
          %691 = sbr.rel (%p689) target = $region40
        $region39: #{tpu_custom_call.1} parent=35 // pred_region
          %s692 = sand.u32 %s72, 1
          %s693 = scalar_lea.sflag [#allocation3], %s692
          %s694 = sand.u32 %s72, 1
          %s695 = smul.addr %s694, 128
          %s696 = scalar_lea.vmem [#allocation2], %s695
          %697 = dma.done %s693, 2048
        $region40: #{tpu_custom_call.1} parent=35 // pred_fallthru
          _
      $region36: #{tpu_custom_call.1} parent=5 // pred_fallthru
        _
    $region6: #{tpu_custom_call.1} parent=1 // loop_footer
      %s15 = sadd.s32 1, %s11
    $region7: #{tpu_custom_call.1} parent=1 // loop_footer_branch
      %10 = sbr.rel target = $region3
    $region8: #{tpu_custom_call.1} parent=1 // loop_exit
      _
    %698 = vsyncpa [#allocation3], 1
    %s699 = scalar_lea.sflag [#allocation3], 1
    %700 = vsyncpa %s699, 1

</llo_original>
